<compile_context>
chip_gen: v6e
topology: v6e:2x2x1
jax: 0.10.0
libtpu: 0.0.40
codegen_flags: <defaults>
</compile_context>

<pallas_src>
import functools

import jax
import jax.numpy as jnp
import numpy as np
from jax.experimental import pallas as pl
from jax.experimental.pallas import tpu as pltpu


# ----------------------------- Kernel ---------------------------------------

def _make_fused_kernel(num_lc):
    """Fused fc1 + (sigmoid -> block-diag LocallyConnected)*num_lc, transposed."""

    def kernel(x_ref, w1_ref, b1_ref, *rest):
        o_ref = rest[-1]
        # hT = W1 @ xT + b1       -> [d*m1, tile_n], batch on the lane axis
        h = jnp.dot(w1_ref[...], x_ref[...],
                    preferred_element_type=jnp.float32) + b1_ref[...]
        for l in range(num_lc):
            w_ref = rest[2 * l]
            b_ref = rest[2 * l + 1]
            # h_nextT = W_bd^T @ sigmoid(hT) + b   (block-diag, lane-dense)
            h = jnp.dot(w_ref[...], jax.nn.sigmoid(h),
                        preferred_element_type=jnp.float32) + b_ref[...]
        o_ref[...] = h.astype(o_ref.dtype)   # [d_out, tile_n], unmasked store

    return kernel


# ----------------------------- Param prep (once, off hot path) ---------------

def prepare_params(params, dims):
    """Fold pos/neg Linear and pack LC weights block-diagonally (transposed)."""
    d, m1 = dims[0], dims[1]
    # torch nn.Linear stores weight as [out, in] = [d*m1, d].  In the
    # transposed layout (hT = W @ xT) it is used as-is: no transpose needed.
    w1 = (params["fc1_pos_w"] - params["fc1_neg_w"]).astype(jnp.float32)      # [d*m1, d]
    b1 = (params["fc1_pos_b"] - params["fc1_neg_b"]).reshape(d * m1, 1)
    b1 = b1.astype(jnp.float32)                                               # column bias

    lc = []
    for (w, b) in params["fc2"]:
        dd, m_in, m_out = w.shape
        eye = jnp.eye(dd, dtype=jnp.float32)
        # transposed block-diag: w_bdT[k*m_out + o, j*m_in + m] = w[j,m,o]*(j==k)
        w_bdT = jnp.einsum("jk,jmo->kojm", eye, w.astype(jnp.float32))
        w_bdT = w_bdT.reshape(dd * m_out, dd * m_in)
        lc.append((w_bdT, b.reshape(dd * m_out, 1).astype(jnp.float32)))
    return w1, b1, tuple(lc)


# ----------------------------- Forward wrapper -------------------------------

@functools.partial(jax.jit, static_argnames=("tile_n",))
def notears_mlp_forward(x, prepared, tile_n=None):
    """Pallas implementation of NotearsMLP_precedent.forward -> [n, d]."""
    w1, b1, lc = prepared
    n, d = x.shape
    dm1 = w1.shape[0]
    d_out = lc[-1][0].shape[0] if lc else dm1   # d * dims[-1] (== d)

    if tile_n is None:
        # Biggest tile (cap 1024) that still leaves >= 2 grid steps so the
        # "parallel" batch axis can be split across v7x's two TensorCores.
        half = (n + 1) // 2
        tile_n = min(1024, max(128, ((half + 127) // 128) * 128))
    grid = (pl.cdiv(n, tile_n),)    # no jnp.pad: Pallas masks the ragged tail

    num_lc = len(lc)
    kernel = _make_fused_kernel(num_lc)

    # Batch on the lane axis throughout: x is fed as [d, n].
    xt = x.T

    in_specs = [
        pl.BlockSpec((d, tile_n), lambda i: (0, i)),     # xT batch tile (lane-dense)
        pl.BlockSpec((dm1, d), lambda i: (0, 0)),        # folded fc1 weight [d*m1, d]
        pl.BlockSpec((dm1, 1), lambda i: (0, 0)),        # folded fc1 bias column
    ]
    args = [xt, w1, b1]
    for (w_bdT, b_col) in lc:
        in_specs.append(pl.BlockSpec(w_bdT.shape, lambda i: (0, 0)))
        in_specs.append(pl.BlockSpec(b_col.shape, lambda i: (0, 0)))
        args.extend([w_bdT, b_col])

    # Advisory cost estimate (helps XLA schedule the custom call).
    flops = 2 * n * dm1 * d
    transcendentals = 0
    bytes_accessed = 4 * (xt.size + w1.size + b1.size + n * d_out)
    for (w_bdT, b_col) in lc:
        flops += 2 * n * w_bdT.shape[0] * w_bdT.shape[1]
        transcendentals += n * w_bdT.shape[1]            # sigmoid on LC input
        bytes_accessed += 4 * (w_bdT.size + b_col.size)

    out_t = pl.pallas_call(
        kernel,
        out_shape=jax.ShapeDtypeStruct((d_out, n), jnp.float32),
        grid=grid,
        in_specs=in_specs,
        out_specs=pl.BlockSpec((d_out, tile_n), lambda i: (0, i)),
        compiler_params=pltpu.CompilerParams(
            dimension_semantics=("parallel",)),
        cost_estimate=pl.CostEstimate(
            flops=int(flops),
            transcendentals=int(transcendentals),
            bytes_accessed=int(bytes_accessed)),
    )(*args)

    return out_t.T    # [n, d]


# ----------------------------- Reference ------------------------------------

def notears_mlp_reference(x, params, dims):
    n = x.shape[0]
    d, m1 = dims[0], dims[1]
    h = (x @ params["fc1_pos_w"].T + params["fc1_pos_b"]
         - (x @ params["fc1_neg_w"].T + params["fc1_neg_b"]))
    h = h.reshape(n, d, m1)
    for (w, b) in params["fc2"]:
        h = jax.nn.sigmoid(h)
        h = jnp.einsum("njm,jmo->njo", h, w) + b[None]
    return h[..., 0]


# ----------------------------- Main -----------------------------------------

if __name__ == "__main__":
    configs = [
        [8, 16, 1],      # canonical NOTEARS-MLP: one locally-connected layer
        [8, 16, 8, 1],   # deeper stack: exercises multiple fused LC layers
    ]
    key = jax.random.PRNGKey(0)
    batch_sizes = [256, 200]   # even split and a ragged last block (no jnp.pad)

    for dims in configs:
        d, m1 = dims[0], dims[1]
        num_lc = len(dims) - 2
        keys = jax.random.split(key, 5 + 2 * num_lc)

        params = {
            # torch nn.Linear(d, d*m1): weight [d*m1, d], bias [d*m1]
            "fc1_pos_w": 0.1 * jax.random.normal(keys[0], (d * m1, d), jnp.float32),
            "fc1_neg_w": 0.1 * jax.random.normal(keys[1], (d * m1, d), jnp.float32),
            "fc1_pos_b": 0.1 * jax.random.normal(keys[2], (d * m1,), jnp.float32),
            "fc1_neg_b": 0.1 * jax.random.normal(keys[3], (d * m1,), jnp.float32),
            # LocallyConnected(d, m_in, m_out): weight [d, m_in, m_out], bias [d, m_out]
            "fc2": [],
        }
        for l in range(num_lc):
            kw, kb = keys[5 + 2 * l - 1], keys[5 + 2 * l]
            params["fc2"].append(
                (0.1 * jax.random.normal(kw, (d, dims[l + 1], dims[l + 2]), jnp.float32),
                 0.1 * jax.random.normal(kb, (d, dims[l + 2]), jnp.float32)))

        prepared = prepare_params(params, dims)

        for n in batch_sizes:
            x = jax.random.normal(jax.random.fold_in(key, 7 + n), (n, d), jnp.float32)

            out = jax.block_until_ready(notears_mlp_forward(x, prepared))

            ref = notears_mlp_reference(x, params, dims)
            np.testing.assert_allclose(np.asarray(out), np.asarray(ref),
                                       rtol=1e-5, atol=1e-5)
            assert out.shape == (n, d)

    print("KERNEL_OK")
</pallas_src>

<mosaic_0001>
module attributes {stable_mosaic.version = 11 : i64} {
  func.func @kernel(%arg0: i32, %arg1: memref<8x128xf32, #tpu.memory_space<vmem>>, %arg2: memref<128x8xf32, #tpu.memory_space<vmem>>, %arg3: memref<128x1xf32, #tpu.memory_space<vmem>>, %arg4: memref<8x128xf32, #tpu.memory_space<vmem>>, %arg5: memref<8x1xf32, #tpu.memory_space<vmem>>, %arg6: memref<8x128xf32, #tpu.memory_space<vmem>>) attributes {dimension_semantics = [#tpu.dimension_semantics<parallel>], iteration_bounds = array<i64: 2>, scalar_prefetch = 0 : i64, scratch_operands = 0 : i64, tpu.core_type = #tpu.core_type<tc>, window_params = [{transform_indices = @transform_0, window_bounds = array<i64: 8, 128>}, {pipeline_mode = #tpu.pipeline_mode<synchronous>, transform_indices = @transform_1, window_bounds = array<i64: 128, 8>}, {pipeline_mode = #tpu.pipeline_mode<synchronous>, transform_indices = @transform_2, window_bounds = array<i64: 128, 1>}, {pipeline_mode = #tpu.pipeline_mode<synchronous>, transform_indices = @transform_3, window_bounds = array<i64: 8, 128>}, {pipeline_mode = #tpu.pipeline_mode<synchronous>, transform_indices = @transform_4, window_bounds = array<i64: 8, 1>}, {transform_indices = @transform_5, window_bounds = array<i64: 8, 128>}]} {
    %c0 = arith.constant 0 : index
    %c0_0 = arith.constant 0 : index
    %0 = vector.load %arg2[%c0, %c0_0] : memref<128x8xf32, #tpu.memory_space<vmem>>, vector<128x8xf32>
    %c0_1 = arith.constant 0 : index
    %c0_2 = arith.constant 0 : index
    %1 = vector.load %arg1[%c0_1, %c0_2] : memref<8x128xf32, #tpu.memory_space<vmem>>, vector<8x128xf32>
    %cst = arith.constant dense<0.000000e+00> : vector<128x128xf32>
    %2 = tpu.matmul %0, %1, %cst {dimension_numbers = #tpu.dot_dimension_numbers<[1], [0], [0], [1], [0, 0, 1, 1], [], []>} : vector<128x8xf32>, vector<8x128xf32>, vector<128x128xf32> -> vector<128x128xf32>
    %c0_3 = arith.constant 0 : index
    %c0_4 = arith.constant 0 : index
    %3 = vector.load %arg3[%c0_3, %c0_4] : memref<128x1xf32, #tpu.memory_space<vmem>>, vector<128x1xf32>
    %4 = vector.broadcast %3 : vector<128x1xf32> to vector<128x128xf32>
    %5 = arith.addf %2, %4 : vector<128x128xf32>
    %c0_5 = arith.constant 0 : index
    %c0_6 = arith.constant 0 : index
    %6 = vector.load %arg4[%c0_5, %c0_6] : memref<8x128xf32, #tpu.memory_space<vmem>>, vector<8x128xf32>
    %7 = arith.negf %5 : vector<128x128xf32>
    %8 = math.exp %7 : vector<128x128xf32>
    %cst_7 = arith.constant 1.000000e+00 : f32
    %9 = vector.broadcast %cst_7 : f32 to vector<128x128xf32>
    %10 = arith.addf %9, %8 : vector<128x128xf32>
    %11 = arith.divf %9, %10 : vector<128x128xf32>
    %cst_8 = arith.constant dense<0.000000e+00> : vector<8x128xf32>
    %12 = tpu.matmul %6, %11, %cst_8 {dimension_numbers = #tpu.dot_dimension_numbers<[1], [0], [0], [1], [0, 0, 1, 1], [], []>} : vector<8x128xf32>, vector<128x128xf32>, vector<8x128xf32> -> vector<8x128xf32>
    %c0_9 = arith.constant 0 : index
    %c0_10 = arith.constant 0 : index
    %13 = vector.load %arg5[%c0_9, %c0_10] : memref<8x1xf32, #tpu.memory_space<vmem>>, vector<8x1xf32>
    %14 = vector.broadcast %13 : vector<8x1xf32> to vector<8x128xf32>
    %15 = arith.addf %12, %14 : vector<8x128xf32>
    %c0_11 = arith.constant 0 : index
    %c0_12 = arith.constant 0 : index
    %16 = vector.load %arg6[%c0_11, %c0_12] : memref<8x128xf32, #tpu.memory_space<vmem>>, vector<8x128xf32>
    tpu.vector_store %arg6[%c0_11, %c0_12], %15 {strides = array<i32>} : memref<8x128xf32, #tpu.memory_space<vmem>>, vector<8x128xf32>,
    return
  }
  func.func @transform_0(%arg0: i32) -> (i32, i32) {
    %c0_i32 = arith.constant 0 : i32
    %c0_i32_0 = arith.constant 0 : i32
    return %c0_i32, %arg0 : i32, i32
  }
  func.func @transform_1(%arg0: i32) -> (i32, i32) {
    %c0_i32 = arith.constant 0 : i32
    %c0_i32_0 = arith.constant 0 : i32
    %c0_i32_1 = arith.constant 0 : i32
    return %c0_i32, %c0_i32_0 : i32, i32
  }
  func.func @transform_2(%arg0: i32) -> (i32, i32) {
    %c0_i32 = arith.constant 0 : i32
    %c0_i32_0 = arith.constant 0 : i32
    %c0_i32_1 = arith.constant 0 : i32
    return %c0_i32, %c0_i32_0 : i32, i32
  }
  func.func @transform_3(%arg0: i32) -> (i32, i32) {
    %c0_i32 = arith.constant 0 : i32
    %c0_i32_0 = arith.constant 0 : i32
    %c0_i32_1 = arith.constant 0 : i32
    return %c0_i32, %c0_i32_0 : i32, i32
  }
  func.func @transform_4(%arg0: i32) -> (i32, i32) {
    %c0_i32 = arith.constant 0 : i32
    %c0_i32_0 = arith.constant 0 : i32
    %c0_i32_1 = arith.constant 0 : i32
    return %c0_i32, %c0_i32_0 : i32, i32
  }
  func.func @transform_5(%arg0: i32) -> (i32, i32) {
    %c0_i32 = arith.constant 0 : i32
    %c0_i32_0 = arith.constant 0 : i32
    return %c0_i32, %arg0 : i32, i32
  }
}

</mosaic_0001>

<llo_original>
// kernel: notears_mlp_forward.1
$region0: #{notears_mlp_forward.1}
  #allocation0 [shape = 'u32[]', space=smem, size = 0x4, offset = 0x4, fixed_abs, tag = 'smem constant byte address 0x4 - core index']
  #allocation1 [shape = 'u32[144,128]{1,0:T(1,128)}', space=vmem, size = 0x12000, scoped, tag = 'internal scratch']
  %s0 = inlined_call_operand.vmem [shape: f32[8,256], index: 0, kind: input, shape index: {}]
  %s1 = inlined_call_operand.vmem [shape: f32[128,8], index: 1, kind: input, shape index: {}]
  %s2 = inlined_call_operand.vmem [shape: f32[128,1], index: 2, kind: input, shape index: {}]
  %s3 = inlined_call_operand.vmem [shape: f32[8,128], index: 3, kind: input, shape index: {}]
  %s4 = inlined_call_operand.vmem [shape: f32[8,1], index: 4, kind: input, shape index: {}]
  %s5 = inlined_call_operand.hbm [shape: f32[8,256], index: 5, kind: output, shape index: {}]
  %s6 = sld [smem:[#allocation0]]
  $region53: #{notears_mlp_forward.1} parent=0
    _
  %s8 = ssub.s32 1, %s6
  %s9 = scalar_select 0, %s8, %s6
  $region1: #{notears_mlp_forward.1} parent=0
    #allocation2 [shape = 'u8[8192]{0}', space=vmem, size = 0x2000, scoped, tag = 'output window, operand 0']
    #allocation3 [shape = 's32[2]{0}', space=sflag, size = 0x8, scoped, tag = 'scoped memory for notears_mlp_forward.1']
    %10 = vsyncpa [#allocation3], 0
    %s11 = scalar_lea.sflag [#allocation3], 1
    %12 = vsyncpa %s11, 0
    loop: start=0, step=1, limit=4
    $region2: #{notears_mlp_forward.1} parent=1 // loop_pre_header
      _
    $region3: #{notears_mlp_forward.1} parent=1 // loop_header
      %s14 = sphi 0, %s18
      %p15 = scmp.ge.s32.totalorder %s14, 4
      %s24 = sphi 0, %s26
      %s27 = sphi 0, %s24
      %s28 = sphi 0, %s27
      %s44 = sphi 0, %s28
      %s48 = sphi 0, %s48
      %s50 = sphi 0, %s48
      %s51 = sphi 0, %s50
      %s65 = sphi 0, %s51
      %s69 = sphi 0, %s69
      %s71 = sphi 0, %s69
      %s72 = sphi 0, %s71
      %s86 = sphi 0, %s72
      %s90 = sphi 0, %s90
      %s92 = sphi 0, %s90
      %s93 = sphi 0, %s92
      %s107 = sphi 0, %s93
      %s111 = sphi 0, %s111
      %s113 = sphi 0, %s111
      %s114 = sphi 0, %s113
      %s128 = sphi 0, %s114
      %s134 = sphi 0, %s136
      %s137 = sphi 0, %s134
      %s138 = sphi 0, %s137
      %s154 = sphi 0, %s138
    $region4: #{notears_mlp_forward.1} parent=1 // loop_header_branch
      %17 = sbr.rel (%p15) target = $region8
    $region5: #{notears_mlp_forward.1} parent=1 // loop_body
      %s19 = ssub.s32 %s14, 1
      %s20 = ssub.s32 %s14, 2
      %s21 = sadd.s32 %s14, 1
      %s22 = ssub.s32 %s14, %s21
      %p23 = scmp.eq.s32.totalorder %s22, 0
      %s25 = sadd.s32 %s24, 1
      %s26 = scalar_select %p23, %s24, %s25
      %p29 = pneg %p23
      %p30 = scmp.eq.s32.totalorder %s14, 1
      %p31 = por %p29, %p30
      %p32 = scmp.ne.s32.totalorder %s24, %s27
      %p33 = scmp.eq.s32.totalorder %s14, 0
      %p34 = por %p32, %p33
      %p35 = scmp.ne.s32.totalorder %s24, %s27
      %p36 = scmp.eq.s32.totalorder %s19, 1
      %p37 = por %p35, %p36
      %p38 = scmp.ne.s32.totalorder %s27, %s28
      %p39 = scmp.eq.s32.totalorder %s19, 0
      %p40 = por %p38, %p39
      %p41 = scmp.ne.s32.totalorder %s27, %s28
      %p42 = scmp.eq.s32.totalorder %s20, 1
      %p43 = por %p41, %p42
      %p45 = scmp.ne.s32.totalorder %s28, %s44
      %p46 = scmp.eq.s32.totalorder %s20, 0
      %p47 = por %p45, %p46
      %s49 = sadd.s32 %s48, 1
      %p52 = scmp.eq.s32.totalorder %s14, 1
      %p53 = scmp.ne.s32.totalorder %s48, %s50
      %p54 = scmp.eq.s32.totalorder %s14, 0
      %p55 = por %p53, %p54
      %p56 = scmp.ne.s32.totalorder %s48, %s50
      %p57 = scmp.eq.s32.totalorder %s19, 1
      %p58 = por %p56, %p57
      %p59 = scmp.ne.s32.totalorder %s50, %s51
      %p60 = scmp.eq.s32.totalorder %s19, 0
      %p61 = por %p59, %p60
      %p62 = scmp.ne.s32.totalorder %s50, %s51
      %p63 = scmp.eq.s32.totalorder %s20, 1
      %p64 = por %p62, %p63
      %p66 = scmp.ne.s32.totalorder %s51, %s65
      %p67 = scmp.eq.s32.totalorder %s20, 0
      %p68 = por %p66, %p67
      %s70 = sadd.s32 %s69, 1
      %p73 = scmp.eq.s32.totalorder %s14, 1
      %p74 = scmp.ne.s32.totalorder %s69, %s71
      %p75 = scmp.eq.s32.totalorder %s14, 0
      %p76 = por %p74, %p75
      %p77 = scmp.ne.s32.totalorder %s69, %s71
      %p78 = scmp.eq.s32.totalorder %s19, 1
      %p79 = por %p77, %p78
      %p80 = scmp.ne.s32.totalorder %s71, %s72
      %p81 = scmp.eq.s32.totalorder %s19, 0
      %p82 = por %p80, %p81
      %p83 = scmp.ne.s32.totalorder %s71, %s72
      %p84 = scmp.eq.s32.totalorder %s20, 1
      %p85 = por %p83, %p84
      %p87 = scmp.ne.s32.totalorder %s72, %s86
      %p88 = scmp.eq.s32.totalorder %s20, 0
      %p89 = por %p87, %p88
      %s91 = sadd.s32 %s90, 1
      %p94 = scmp.eq.s32.totalorder %s14, 1
      %p95 = scmp.ne.s32.totalorder %s90, %s92
      %p96 = scmp.eq.s32.totalorder %s14, 0
      %p97 = por %p95, %p96
      %p98 = scmp.ne.s32.totalorder %s90, %s92
      %p99 = scmp.eq.s32.totalorder %s19, 1
      %p100 = por %p98, %p99
      %p101 = scmp.ne.s32.totalorder %s92, %s93
      %p102 = scmp.eq.s32.totalorder %s19, 0
      %p103 = por %p101, %p102
      %p104 = scmp.ne.s32.totalorder %s92, %s93
      %p105 = scmp.eq.s32.totalorder %s20, 1
      %p106 = por %p104, %p105
      %p108 = scmp.ne.s32.totalorder %s93, %s107
      %p109 = scmp.eq.s32.totalorder %s20, 0
      %p110 = por %p108, %p109
      %s112 = sadd.s32 %s111, 1
      %p115 = scmp.eq.s32.totalorder %s14, 1
      %p116 = scmp.ne.s32.totalorder %s111, %s113
      %p117 = scmp.eq.s32.totalorder %s14, 0
      %p118 = por %p116, %p117
      %p119 = scmp.ne.s32.totalorder %s111, %s113
      %p120 = scmp.eq.s32.totalorder %s19, 1
      %p121 = por %p119, %p120
      %p122 = scmp.ne.s32.totalorder %s113, %s114
      %p123 = scmp.eq.s32.totalorder %s19, 0
      %p124 = por %p122, %p123
      %p125 = scmp.ne.s32.totalorder %s113, %s114
      %p126 = scmp.eq.s32.totalorder %s20, 1
      %p127 = por %p125, %p126
      %p129 = scmp.ne.s32.totalorder %s114, %s128
      %p130 = scmp.eq.s32.totalorder %s20, 0
      %p131 = por %p129, %p130
      %s132 = ssub.s32 %s14, %s21
      %p133 = scmp.eq.s32.totalorder %s132, 0
      %s135 = sadd.s32 %s134, 1
      %s136 = scalar_select %p133, %s134, %s135
      %p139 = pneg %p133
      %p140 = scmp.eq.s32.totalorder %s14, 1
      %p141 = por %p139, %p140
      %p142 = scmp.ne.s32.totalorder %s134, %s137
      %p143 = scmp.eq.s32.totalorder %s14, 0
      %p144 = por %p142, %p143
      %p145 = scmp.ne.s32.totalorder %s134, %s137
      %p146 = scmp.eq.s32.totalorder %s19, 1
      %p147 = por %p145, %p146
      %p148 = scmp.ne.s32.totalorder %s137, %s138
      %p149 = scmp.eq.s32.totalorder %s19, 0
      %p150 = por %p148, %p149
      %p151 = scmp.ne.s32.totalorder %s137, %s138
      %p152 = scmp.eq.s32.totalorder %s20, 1
      %p153 = por %p151, %p152
      %p155 = scmp.ne.s32.totalorder %s138, %s154
      %p156 = scmp.eq.s32.totalorder %s20, 0
      %p157 = por %p155, %p156
      %p158 = scmp.le.s32.totalorder 1, %s14
      %p159 = scmp.lt.s32.totalorder %s14, 3
      %p160 = pnand %p158, %p159
      %p161 = pneg %p160
      // Predicated region
      $region9: #{notears_mlp_forward.1} parent=5 // pred_check
        _
      $region10: #{notears_mlp_forward.1} parent=5 // pred_check_branch
        %163 = sbr.rel (%p160) target = $region12
      $region11: #{notears_mlp_forward.1} parent=5 // pred_region
        %s164 = ssub.s32 %s14, 1
        // Predicated region
        $region13: #{notears_mlp_forward.1} parent=11 // pred_check
          %p165 = pneg %p61
        $region14: #{notears_mlp_forward.1} parent=11 // pred_check_branch
          %167 = sbr.rel (%p165) target = $region16
        $region15: #{notears_mlp_forward.1} parent=11 // pred_region
          _
        $region16: #{notears_mlp_forward.1} parent=11 // pred_fallthru
          _
        // Predicated region
        $region17: #{notears_mlp_forward.1} parent=11 // pred_check
          %p168 = pneg %p82
        $region18: #{notears_mlp_forward.1} parent=11 // pred_check_branch
          %170 = sbr.rel (%p168) target = $region20
        $region19: #{notears_mlp_forward.1} parent=11 // pred_region
          _
        $region20: #{notears_mlp_forward.1} parent=11 // pred_fallthru
          _
        // Predicated region
        $region21: #{notears_mlp_forward.1} parent=11 // pred_check
          %p171 = pneg %p103
        $region22: #{notears_mlp_forward.1} parent=11 // pred_check_branch
          %173 = sbr.rel (%p171) target = $region24
        $region23: #{notears_mlp_forward.1} parent=11 // pred_region
          _
        $region24: #{notears_mlp_forward.1} parent=11 // pred_fallthru
          _
        // Predicated region
        $region25: #{notears_mlp_forward.1} parent=11 // pred_check
          %p174 = pneg %p124
        $region26: #{notears_mlp_forward.1} parent=11 // pred_check_branch
          %176 = sbr.rel (%p174) target = $region28
        $region27: #{notears_mlp_forward.1} parent=11 // pred_region
          _
        $region28: #{notears_mlp_forward.1} parent=11 // pred_fallthru
          _
      $region12: #{notears_mlp_forward.1} parent=5 // pred_fallthru
        _
      %p177 = scmp.lt.s32.totalorder %s14, 2
      // Predicated region
      $region29: #{notears_mlp_forward.1} parent=5 // pred_check
        %p178 = pneg %p177
      $region30: #{notears_mlp_forward.1} parent=5 // pred_check_branch
        %180 = sbr.rel (%p178) target = $region32
      $region31: #{notears_mlp_forward.1} parent=5 // pred_region
        // Predicated region
        $region33: #{notears_mlp_forward.1} parent=31 // pred_check
          %p181 = pneg %p34
        $region34: #{notears_mlp_forward.1} parent=31 // pred_check_branch
          %183 = sbr.rel (%p181) target = $region36
        $region35: #{notears_mlp_forward.1} parent=31 // pred_region
          %p184 = scmp.lt.s32.totalorder %s14, 1
          %s185 = scalar_select %p184, %s14, 1
          %s186 = smul.addr %s185, 8
          %s187 = scalar_lea.vmem %s0, %s186
        $region36: #{notears_mlp_forward.1} parent=31 // pred_fallthru
          _
      $region32: #{notears_mlp_forward.1} parent=5 // pred_fallthru
        _
      %p188 = scmp.le.s32.totalorder 1, %s14
      %p189 = scmp.lt.s32.totalorder %s14, 3
      %p190 = pnand %p188, %p189
      %p191 = pneg %p190
      // Predicated region
      $region37: #{notears_mlp_forward.1} parent=5 // pred_check
        _
      $region38: #{notears_mlp_forward.1} parent=5 // pred_check_branch
        %193 = sbr.rel (%p190) target = $region40
      $region39: #{notears_mlp_forward.1} parent=5 // pred_region
        %s194 = ssub.s32 %s14, 1
        %p195 = scmp.lt.s32.totalorder %s19, 1
        %s196 = scalar_select %p195, %s19, 1
        %s197 = smul.addr %s196, 8
        %s198 = scalar_lea.vmem %s0, %s197
        %p199 = pneg %p40
        %p200 = pneg %p37
        %p201 = pneg %p61
        %p202 = pneg %p58
        %p203 = pneg %p82
        %p204 = pneg %p79
        %p205 = pneg %p103
        %p206 = pneg %p100
        %p207 = pneg %p124
        %p208 = pneg %p121
        %p209 = pneg %p150
        %p210 = pneg %p147
        %s211 = sand.u32 %s137, 1
        %s212 = scalar_lea.sflag [#allocation3], %s211
        %s213 = sand.u32 %s137, 1
        %s214 = smul.addr %s213, 8
        %s215 = scalar_lea.vmem [#allocation2], %s214
        %p216 = scmp.lt.s32.totalorder %s19, 1
        %s217 = scalar_select %p216, %s19, 1
        %s218 = smul.addr %s217, 8
        %s219 = scalar_lea.vmem %s0, %s218
        %v220 = vld [vmem:[%s1] sm:$0xff]
        %v221 = vld [vmem:[%s1 + $0x8] sm:$0xff]
        %v222 = vld [vmem:[%s1 + $0x10] sm:$0xff]
        %v223 = vld [vmem:[%s1 + $0x18] sm:$0xff]
        %v224 = vld [vmem:[%s1 + $0x20] sm:$0xff]
        %v225 = vld [vmem:[%s1 + $0x28] sm:$0xff]
        %v226 = vld [vmem:[%s1 + $0x30] sm:$0xff]
        %v227 = vld [vmem:[%s1 + $0x38] sm:$0xff]
        %v228 = vld [vmem:[%s1 + $0x40] sm:$0xff]
        %v229 = vld [vmem:[%s1 + $0x48] sm:$0xff]
        %v230 = vld [vmem:[%s1 + $0x50] sm:$0xff]
        %v231 = vld [vmem:[%s1 + $0x58] sm:$0xff]
        %v232 = vld [vmem:[%s1 + $0x60] sm:$0xff]
        %v233 = vld [vmem:[%s1 + $0x68] sm:$0xff]
        %v234 = vld [vmem:[%s1 + $0x70] sm:$0xff]
        %v235 = vld [vmem:[%s1 + $0x78] sm:$0xff]
        %v236 = vld [vmem:[%s219] sm:$0xff]
        %v237 = vld [vmem:[%s2] sm:$0xff]
        %v238 = vld [vmem:[%s2 + $0x8] sm:$0xff]
        %v239 = vld [vmem:[%s2 + $0x10] sm:$0xff]
        %v240 = vld [vmem:[%s2 + $0x18] sm:$0xff]
        %v241 = vld [vmem:[%s2 + $0x20] sm:$0xff]
        %v242 = vld [vmem:[%s2 + $0x28] sm:$0xff]
        %v243 = vld [vmem:[%s2 + $0x30] sm:$0xff]
        %v244 = vld [vmem:[%s2 + $0x38] sm:$0xff]
        %v245 = vld [vmem:[%s2 + $0x40] sm:$0xff]
        %v246 = vld [vmem:[%s2 + $0x48] sm:$0xff]
        %v247 = vld [vmem:[%s2 + $0x50] sm:$0xff]
        %v248 = vld [vmem:[%s2 + $0x58] sm:$0xff]
        %v249 = vld [vmem:[%s2 + $0x60] sm:$0xff]
        %v250 = vld [vmem:[%s2 + $0x68] sm:$0xff]
        %v251 = vld [vmem:[%s2 + $0x70] sm:$0xff]
        %v252 = vld [vmem:[%s2 + $0x78] sm:$0xff]
        %254 = vset.pattern.permute.xlu0 0
        %255 = vperm.xlu0 %254, %v237
        %v256 = vpop.permute.xlu0 %255
        %259 = vset.pattern.permute.xlu0 0
        %260 = vperm.xlu0 %259, %v238
        %v261 = vpop.permute.xlu0 %260
        %264 = vset.pattern.permute.xlu0 0
        %265 = vperm.xlu0 %264, %v239
        %v266 = vpop.permute.xlu0 %265
        %269 = vset.pattern.permute.xlu0 0
        %270 = vperm.xlu0 %269, %v240
        %v271 = vpop.permute.xlu0 %270
        %274 = vset.pattern.permute.xlu0 0
        %275 = vperm.xlu0 %274, %v241
        %v276 = vpop.permute.xlu0 %275
        %279 = vset.pattern.permute.xlu0 0
        %280 = vperm.xlu0 %279, %v242
        %v281 = vpop.permute.xlu0 %280
        %284 = vset.pattern.permute.xlu0 0
        %285 = vperm.xlu0 %284, %v243
        %v286 = vpop.permute.xlu0 %285
        %289 = vset.pattern.permute.xlu0 0
        %290 = vperm.xlu0 %289, %v244
        %v291 = vpop.permute.xlu0 %290
        %294 = vset.pattern.permute.xlu0 0
        %295 = vperm.xlu0 %294, %v245
        %v296 = vpop.permute.xlu0 %295
        %299 = vset.pattern.permute.xlu0 0
        %300 = vperm.xlu0 %299, %v246
        %v301 = vpop.permute.xlu0 %300
        %304 = vset.pattern.permute.xlu0 0
        %305 = vperm.xlu0 %304, %v247
        %v306 = vpop.permute.xlu0 %305
        %309 = vset.pattern.permute.xlu0 0
        %310 = vperm.xlu0 %309, %v248
        %v311 = vpop.permute.xlu0 %310
        %314 = vset.pattern.permute.xlu0 0
        %315 = vperm.xlu0 %314, %v249
        %v316 = vpop.permute.xlu0 %315
        %319 = vset.pattern.permute.xlu0 0
        %320 = vperm.xlu0 %319, %v250
        %v321 = vpop.permute.xlu0 %320
        %324 = vset.pattern.permute.xlu0 0
        %325 = vperm.xlu0 %324, %v251
        %v326 = vpop.permute.xlu0 %325
        %329 = vset.pattern.permute.xlu0 0
        %330 = vperm.xlu0 %329, %v252
        %v331 = vpop.permute.xlu0 %330
        %vm333 = vcmask 64512
        %v335 = vsel %vm333, %v220, 0
        %v338 = vsel %vm333, %v221, 0
        %v341 = vsel %vm333, %v222, 0
        %v344 = vsel %vm333, %v223, 0
        %v347 = vsel %vm333, %v224, 0
        %v350 = vsel %vm333, %v225, 0
        %v353 = vsel %vm333, %v226, 0
        %v356 = vsel %vm333, %v227, 0
        %v359 = vsel %vm333, %v228, 0
        %v362 = vsel %vm333, %v229, 0
        %v365 = vsel %vm333, %v230, 0
        %v368 = vsel %vm333, %v231, 0
        %v371 = vsel %vm333, %v232, 0
        %v374 = vsel %vm333, %v233, 0
        %v377 = vsel %vm333, %v234, 0
        %v380 = vsel %vm333, %v235, 0
        %382 = vmatprep.subr.mxu0 0.0
        %383 = vmatpush1.msra.mxu0 0.0
        %384 = vmatprep.subr.mxu0 0.0
        %385 = vmatpush1.msra.mxu0 0.0
        %386 = vmatprep.subr.mxu0 0.0
        %387 = vmatpush1.msra.mxu0 0.0
        %388 = vmatprep.subr.mxu0 0.0
        %389 = vmatpush1.msra.mxu0 0.0
        %390 = vmatprep.subr.mxu0 0.0
        %391 = vmatpush1.msra.mxu0 0.0
        %392 = vmatprep.subr.mxu0 0.0
        %393 = vmatpush1.msra.mxu0 0.0
        %394 = vmatprep.subr.mxu0 0.0
        %395 = vmatpush1.msra.mxu0 0.0
        %396 = vmatprep.subr.mxu0 0.0
        %397 = vmatpush1.msra.mxu0 0.0
        %398 = vmatprep.subr.mxu0 0.0
        %399 = vmatpush1.msra.mxu0 0.0
        %400 = vmatprep.subr.mxu0 0.0
        %401 = vmatpush1.msra.mxu0 0.0
        %402 = vmatprep.subr.mxu0 0.0
        %403 = vmatpush1.msra.mxu0 0.0
        %404 = vmatprep.subr.mxu0 0.0
        %405 = vmatpush1.msra.mxu0 0.0
        %406 = vmatprep.subr.mxu0 0.0
        %407 = vmatpush1.msra.mxu0 0.0
        %408 = vmatprep.subr.mxu0 0.0
        %409 = vmatpush1.msra.mxu0 0.0
        %410 = vmatprep.subr.mxu0 0.0
        %411 = vmatpush1.msra.mxu0 0.0
        %412 = vmatprep.subr.mxu0 0.0
        %413 = vmatpush1.msra.mxu0 %v236
        %414 = vmatprep.subr.mxu0 0.0
        %415 = vmatpush2.msra.mxu0 0.0
        %416 = vmatprep.subr.mxu0 0.0
        %417 = vmatpush2.msra.mxu0 0.0
        %418 = vmatprep.subr.mxu0 0.0
        %419 = vmatpush2.msra.mxu0 0.0
        %420 = vmatprep.subr.mxu0 0.0
        %421 = vmatpush2.msra.mxu0 0.0
        %422 = vmatprep.subr.mxu0 0.0
        %423 = vmatpush2.msra.mxu0 0.0
        %424 = vmatprep.subr.mxu0 0.0
        %425 = vmatpush2.msra.mxu0 0.0
        %426 = vmatprep.subr.mxu0 0.0
        %427 = vmatpush2.msra.mxu0 0.0
        %428 = vmatprep.subr.mxu0 0.0
        %429 = vmatpush2.msra.mxu0 0.0
        %430 = vmatprep.subr.mxu0 0.0
        %431 = vmatpush2.msra.mxu0 0.0
        %432 = vmatprep.subr.mxu0 0.0
        %433 = vmatpush2.msra.mxu0 0.0
        %434 = vmatprep.subr.mxu0 0.0
        %435 = vmatpush2.msra.mxu0 0.0
        %436 = vmatprep.subr.mxu0 0.0
        %437 = vmatpush2.msra.mxu0 0.0
        %438 = vmatprep.subr.mxu0 0.0
        %439 = vmatpush2.msra.mxu0 0.0
        %440 = vmatprep.subr.mxu0 0.0
        %441 = vmatpush2.msra.mxu0 0.0
        %442 = vmatprep.subr.mxu0 0.0
        %443 = vmatpush2.msra.mxu0 0.0
        %444 = vmatprep.subr.mxu0 0.0
        %445 = vmatpush2.msra.mxu0 0.0
        %446 = vmatprep.mubr.f32.mxu0 0.0
        %447 = vmatmul.mubr.f32.gmra.mxu0 %v335
        %v448 = vpop.f32.mrf.mxu0
        %v449 = vadd.f32 %v256, %v448
        %v450 = vpop.f32.mrf.mxu0
        %451 = vmatprep.mubr.f32.mxu0 0.0
        %452 = vmatmul.mubr.f32.gmra.mxu0 %v338
        %v453 = vpop.f32.mrf.mxu0
        %v454 = vadd.f32 %v261, %v453
        %v455 = vpop.f32.mrf.mxu0
        %456 = vmatprep.mubr.f32.mxu0 0.0
        %457 = vmatmul.mubr.f32.gmra.mxu0 %v341
        %v458 = vpop.f32.mrf.mxu0
        %v459 = vadd.f32 %v266, %v458
        %v460 = vpop.f32.mrf.mxu0
        %461 = vmatprep.mubr.f32.mxu0 0.0
        %462 = vmatmul.mubr.f32.gmra.mxu0 %v344
        %v463 = vpop.f32.mrf.mxu0
        %v464 = vadd.f32 %v271, %v463
        %v465 = vpop.f32.mrf.mxu0
        %466 = vmatprep.mubr.f32.mxu0 0.0
        %467 = vmatmul.mubr.f32.gmra.mxu0 %v347
        %v468 = vpop.f32.mrf.mxu0
        %v469 = vadd.f32 %v276, %v468
        %v470 = vpop.f32.mrf.mxu0
        %471 = vmatprep.mubr.f32.mxu0 0.0
        %472 = vmatmul.mubr.f32.gmra.mxu0 %v350
        %v473 = vpop.f32.mrf.mxu0
        %v474 = vadd.f32 %v281, %v473
        %v475 = vpop.f32.mrf.mxu0
        %476 = vmatprep.mubr.f32.mxu0 0.0
        %477 = vmatmul.mubr.f32.gmra.mxu0 %v353
        %v478 = vpop.f32.mrf.mxu0
        %v479 = vadd.f32 %v286, %v478
        %v480 = vpop.f32.mrf.mxu0
        %481 = vmatprep.mubr.f32.mxu0 0.0
        %482 = vmatmul.mubr.f32.gmra.mxu0 %v356
        %v483 = vpop.f32.mrf.mxu0
        %v484 = vadd.f32 %v291, %v483
        %v485 = vpop.f32.mrf.mxu0
        %486 = vmatprep.mubr.f32.mxu0 0.0
        %487 = vmatmul.mubr.f32.gmra.mxu0 %v359
        %v488 = vpop.f32.mrf.mxu0
        %v489 = vadd.f32 %v296, %v488
        %v490 = vpop.f32.mrf.mxu0
        %491 = vmatprep.mubr.f32.mxu0 0.0
        %492 = vmatmul.mubr.f32.gmra.mxu0 %v362
        %v493 = vpop.f32.mrf.mxu0
        %v494 = vadd.f32 %v301, %v493
        %v495 = vpop.f32.mrf.mxu0
        %496 = vmatprep.mubr.f32.mxu0 0.0
        %497 = vmatmul.mubr.f32.gmra.mxu0 %v365
        %v498 = vpop.f32.mrf.mxu0
        %v499 = vadd.f32 %v306, %v498
        %v500 = vpop.f32.mrf.mxu0
        %501 = vmatprep.mubr.f32.mxu0 0.0
        %502 = vmatmul.mubr.f32.gmra.mxu0 %v368
        %v503 = vpop.f32.mrf.mxu0
        %v504 = vadd.f32 %v311, %v503
        %v505 = vpop.f32.mrf.mxu0
        %506 = vmatprep.mubr.f32.mxu0 0.0
        %507 = vmatmul.mubr.f32.gmra.mxu0 %v371
        %v508 = vpop.f32.mrf.mxu0
        %v509 = vadd.f32 %v316, %v508
        %v510 = vpop.f32.mrf.mxu0
        %511 = vmatprep.mubr.f32.mxu0 0.0
        %512 = vmatmul.mubr.f32.gmra.mxu0 %v374
        %v513 = vpop.f32.mrf.mxu0
        %v514 = vadd.f32 %v321, %v513
        %v515 = vpop.f32.mrf.mxu0
        %516 = vmatprep.mubr.f32.mxu0 0.0
        %517 = vmatmul.mubr.f32.gmra.mxu0 %v377
        %v518 = vpop.f32.mrf.mxu0
        %v519 = vadd.f32 %v326, %v518
        %v520 = vpop.f32.mrf.mxu0
        %521 = vmatprep.mubr.f32.mxu0 0.0
        %522 = vmatmul.mubr.f32.gmra.mxu0 %v380
        %v523 = vpop.f32.mrf.mxu0
        %v524 = vadd.f32 %v331, %v523
        %v525 = vpop.f32.mrf.mxu0
        %526 = vdwg.mxu0
        %v527 = vld [vmem:[%s3] sm:$0xff]
        %v528 = vxor.u32 %v449, 2147483648
        %v529 = vxor.u32 %v454, 2147483648
        %v530 = vxor.u32 %v459, 2147483648
        %v531 = vxor.u32 %v464, 2147483648
        %v532 = vxor.u32 %v469, 2147483648
        %v533 = vxor.u32 %v474, 2147483648
        %v534 = vxor.u32 %v479, 2147483648
        %v535 = vxor.u32 %v484, 2147483648
        %v536 = vxor.u32 %v489, 2147483648
        %v537 = vxor.u32 %v494, 2147483648
        %v538 = vxor.u32 %v499, 2147483648
        %v539 = vxor.u32 %v504, 2147483648
        %v540 = vxor.u32 %v509, 2147483648
        %v541 = vxor.u32 %v514, 2147483648
        %v542 = vxor.u32 %v519, 2147483648
        %v543 = vxor.u32 %v524, 2147483648
        %v544 = vmul.f32 %v528, 1.442695
        %v545 = vpow.pop %v544
        %v546 = vmul.f32 %v529, 1.442695
        %v547 = vpow.pop %v546
        %v548 = vmul.f32 %v530, 1.442695
        %v549 = vpow.pop %v548
        %v550 = vmul.f32 %v531, 1.442695
        %v551 = vpow.pop %v550
        %v552 = vmul.f32 %v532, 1.442695
        %v553 = vpow.pop %v552
        %v554 = vmul.f32 %v533, 1.442695
        %v555 = vpow.pop %v554
        %v556 = vmul.f32 %v534, 1.442695
        %v557 = vpow.pop %v556
        %v558 = vmul.f32 %v535, 1.442695
        %v559 = vpow.pop %v558
        %v560 = vmul.f32 %v536, 1.442695
        %v561 = vpow.pop %v560
        %v562 = vmul.f32 %v537, 1.442695
        %v563 = vpow.pop %v562
        %v564 = vmul.f32 %v538, 1.442695
        %v565 = vpow.pop %v564
        %v566 = vmul.f32 %v539, 1.442695
        %v567 = vpow.pop %v566
        %v568 = vmul.f32 %v540, 1.442695
        %v569 = vpow.pop %v568
        %v570 = vmul.f32 %v541, 1.442695
        %v571 = vpow.pop %v570
        %v572 = vmul.f32 %v542, 1.442695
        %v573 = vpow.pop %v572
        %v574 = vmul.f32 %v543, 1.442695
        %v575 = vpow.pop %v574
        %v576 = vadd.f32 %v545, 1.0
        %v577 = vadd.f32 %v547, 1.0
        %v578 = vadd.f32 %v549, 1.0
        %v579 = vadd.f32 %v551, 1.0
        %v580 = vadd.f32 %v553, 1.0
        %v581 = vadd.f32 %v555, 1.0
        %v582 = vadd.f32 %v557, 1.0
        %v583 = vadd.f32 %v559, 1.0
        %v584 = vadd.f32 %v561, 1.0
        %v585 = vadd.f32 %v563, 1.0
        %v586 = vadd.f32 %v565, 1.0
        %v587 = vadd.f32 %v567, 1.0
        %v588 = vadd.f32 %v569, 1.0
        %v589 = vadd.f32 %v571, 1.0
        %v590 = vadd.f32 %v573, 1.0
        %v591 = vadd.f32 %v575, 1.0
        %v592 = vrcp.pop %v576
        %v593 = vmul.f32 1.0, %v592
        %v594 = vrcp.pop %v577
        %v595 = vmul.f32 1.0, %v594
        %v596 = vrcp.pop %v578
        %v597 = vmul.f32 1.0, %v596
        %v598 = vrcp.pop %v579
        %v599 = vmul.f32 1.0, %v598
        %v600 = vrcp.pop %v580
        %v601 = vmul.f32 1.0, %v600
        %v602 = vrcp.pop %v581
        %v603 = vmul.f32 1.0, %v602
        %v604 = vrcp.pop %v582
        %v605 = vmul.f32 1.0, %v604
        %v606 = vrcp.pop %v583
        %v607 = vmul.f32 1.0, %v606
        %v608 = vrcp.pop %v584
        %v609 = vmul.f32 1.0, %v608
        %v610 = vrcp.pop %v585
        %v611 = vmul.f32 1.0, %v610
        %v612 = vrcp.pop %v586
        %v613 = vmul.f32 1.0, %v612
        %v614 = vrcp.pop %v587
        %v615 = vmul.f32 1.0, %v614
        %v616 = vrcp.pop %v588
        %v617 = vmul.f32 1.0, %v616
        %v618 = vrcp.pop %v589
        %v619 = vmul.f32 1.0, %v618
        %v620 = vrcp.pop %v590
        %v621 = vmul.f32 1.0, %v620
        %v622 = vrcp.pop %v591
        %v623 = vmul.f32 1.0, %v622
        %v624 = vld [vmem:[%s4] sm:$0xff]
        %626 = vset.pattern.permute.xlu0 0
        %627 = vperm.xlu0 %626, %v624
        %v628 = vpop.permute.xlu0 %627
        %630 = vmatprep.subr.mxu0 0.0
        %631 = vmatpush1.msra.mxu0 %v623
        %632 = vmatprep.subr.mxu0 0.0
        %633 = vmatpush1.msra.mxu0 %v621
        %634 = vmatprep.subr.mxu0 0.0
        %635 = vmatpush1.msra.mxu0 %v619
        %636 = vmatprep.subr.mxu0 0.0
        %637 = vmatpush1.msra.mxu0 %v617
        %638 = vmatprep.subr.mxu0 0.0
        %639 = vmatpush1.msra.mxu0 %v615
        %640 = vmatprep.subr.mxu0 0.0
        %641 = vmatpush1.msra.mxu0 %v613
        %642 = vmatprep.subr.mxu0 0.0
        %643 = vmatpush1.msra.mxu0 %v611
        %644 = vmatprep.subr.mxu0 0.0
        %645 = vmatpush1.msra.mxu0 %v609
        %646 = vmatprep.subr.mxu0 0.0
        %647 = vmatpush1.msra.mxu0 %v607
        %648 = vmatprep.subr.mxu0 0.0
        %649 = vmatpush1.msra.mxu0 %v605
        %650 = vmatprep.subr.mxu0 0.0
        %651 = vmatpush1.msra.mxu0 %v603
        %652 = vmatprep.subr.mxu0 0.0
        %653 = vmatpush1.msra.mxu0 %v601
        %654 = vmatprep.subr.mxu0 0.0
        %655 = vmatpush1.msra.mxu0 %v599
        %656 = vmatprep.subr.mxu0 0.0
        %657 = vmatpush1.msra.mxu0 %v597
        %658 = vmatprep.subr.mxu0 0.0
        %659 = vmatpush1.msra.mxu0 %v595
        %660 = vmatprep.subr.mxu0 0.0
        %661 = vmatpush1.msra.mxu0 %v593
        %662 = vmatprep.subr.mxu0 0.0
        %663 = vmatpush2.msra.mxu0 0.0
        %664 = vmatprep.subr.mxu0 0.0
        %665 = vmatpush2.msra.mxu0 0.0
        %666 = vmatprep.subr.mxu0 0.0
        %667 = vmatpush2.msra.mxu0 0.0
        %668 = vmatprep.subr.mxu0 0.0
        %669 = vmatpush2.msra.mxu0 0.0
        %670 = vmatprep.subr.mxu0 0.0
        %671 = vmatpush2.msra.mxu0 0.0
        %672 = vmatprep.subr.mxu0 0.0
        %673 = vmatpush2.msra.mxu0 0.0
        %674 = vmatprep.subr.mxu0 0.0
        %675 = vmatpush2.msra.mxu0 0.0
        %676 = vmatprep.subr.mxu0 0.0
        %677 = vmatpush2.msra.mxu0 0.0
        %678 = vmatprep.subr.mxu0 0.0
        %679 = vmatpush2.msra.mxu0 0.0
        %680 = vmatprep.subr.mxu0 0.0
        %681 = vmatpush2.msra.mxu0 0.0
        %682 = vmatprep.subr.mxu0 0.0
        %683 = vmatpush2.msra.mxu0 0.0
        %684 = vmatprep.subr.mxu0 0.0
        %685 = vmatpush2.msra.mxu0 0.0
        %686 = vmatprep.subr.mxu0 0.0
        %687 = vmatpush2.msra.mxu0 0.0
        %688 = vmatprep.subr.mxu0 0.0
        %689 = vmatpush2.msra.mxu0 0.0
        %690 = vmatprep.subr.mxu0 0.0
        %691 = vmatpush2.msra.mxu0 0.0
        %692 = vmatprep.subr.mxu0 0.0
        %693 = vmatpush2.msra.mxu0 0.0
        %694 = vmatprep.mubr.f32.mxu0 0.0
        %695 = vmatmul.mubr.f32.gmra.mxu0 %v527
        %v696 = vpop.f32.mrf.mxu0
        %v697 = vadd.f32 %v628, %v696
        %v698 = vpop.f32.mrf.mxu0
        %699 = vdwg.mxu0
        %700 = vst [vmem:[%s215] sm:$0xff] %v697
        %s701 = sand.u32 %s137, 1
        %s702 = scalar_lea.sflag [#allocation3], %s701
        %s703 = sand.u32 %s137, 1
        %s704 = smul.addr %s703, 8
        %s705 = scalar_lea.vmem [#allocation2], %s704
        // Predicated region
        $region41: #{notears_mlp_forward.1} parent=39 // pred_check
          %p706 = pneg %p147
        $region42: #{notears_mlp_forward.1} parent=39 // pred_check_branch
          %708 = sbr.rel (%p706) target = $region44
        $region43: #{notears_mlp_forward.1} parent=39 // pred_region
          %s710 = ssub.s32 128, 128
          %711 = vsyncadd %s702, %s710
          %s712 = smul.addr %s19, 128
          %s713 = scalar_lea.hbm %s5, %s712
          %s715 = sshll.u32 %s705, 4
          %s716 = int_to_ptr.vmem [resolvable:$true] %s715
          %718 = dma.vmem_to_hbm [thread:$0]  %s716, 128, %s713, %s702
        $region44: #{notears_mlp_forward.1} parent=39 // pred_fallthru
          _
      $region40: #{notears_mlp_forward.1} parent=5 // pred_fallthru
        _
      %p719 = scmp.le.s32.totalorder 2, %s14
      // Predicated region
      $region45: #{notears_mlp_forward.1} parent=5 // pred_check
        %p720 = pneg %p719
      $region46: #{notears_mlp_forward.1} parent=5 // pred_check_branch
        %722 = sbr.rel (%p720) target = $region48
      $region47: #{notears_mlp_forward.1} parent=5 // pred_region
        %s723 = ssub.s32 %s14, 2
        // Predicated region
        $region49: #{notears_mlp_forward.1} parent=47 // pred_check
          %p724 = pneg %p153
        $region50: #{notears_mlp_forward.1} parent=47 // pred_check_branch
          %726 = sbr.rel (%p724) target = $region52
        $region51: #{notears_mlp_forward.1} parent=47 // pred_region
          %s727 = sand.u32 %s138, 1
          %s728 = scalar_lea.sflag [#allocation3], %s727
          %s729 = sand.u32 %s138, 1
          %s730 = smul.addr %s729, 8
          %s731 = scalar_lea.vmem [#allocation2], %s730
          %732 = dma.done %s728, 128
        $region52: #{notears_mlp_forward.1} parent=47 // pred_fallthru
          _
      $region48: #{notears_mlp_forward.1} parent=5 // pred_fallthru
        _
    $region6: #{notears_mlp_forward.1} parent=1 // loop_footer
      %s18 = sadd.s32 1, %s14
    $region7: #{notears_mlp_forward.1} parent=1 // loop_footer_branch
      %13 = sbr.rel target = $region3
    $region8: #{notears_mlp_forward.1} parent=1 // loop_exit
      _
    %733 = vsyncpa [#allocation3], 1
    %s734 = scalar_lea.sflag [#allocation3], 1
    %735 = vsyncpa %s734, 1

</llo_original>
